<compile_context>
chip_gen: v7x
topology: tpu7x:2x2x1
jax: 0.10.0
libtpu: 0.0.40
codegen_flags: <defaults>
</compile_context>

<pallas_src>
import jax
import jax.numpy as jnp
from jax import lax
from jax.experimental import pallas as pl
from jax.experimental.pallas import tpu as pltpu

C_IN = 5
C_IN_PAD = 8                        # pad channels to a full sublane group
C_OUT = 16
KSIZE = 3
DILATIONS = (1, 2, 3, 4, 10)
NUM_D = len(DILATIONS)
K_PER_D = KSIZE * C_IN_PAD          # 24 contraction rows per dilation
K_TOTAL = NUM_D * K_PER_D           # 120
M_TOTAL = NUM_D * C_OUT             # 80
MAX_SHIFT = (KSIZE - 1) * max(DILATIONS)   # 20
# 15 (d, k) taps use only 9 unique lane shifts.
UNIQUE_SHIFTS = tuple(sorted({k * d for d in DILATIONS for k in range(KSIZE)}))


def _round_up(v, m):
    return ((v + m - 1) // m) * m


def _segment_stride(length):
    # Shared per-batch column stride for BOTH input and output: valid data
    # plus >= MAX_SHIFT zero guard columns, rounded up to a lane multiple.
    return _round_up(max(length + MAX_SHIFT, 128), 128)


def pack_weights(weights, dtype=jnp.float32):
    """Pack the 5 (C_OUT, C_IN, KSIZE) conv weights into one block-diagonal
    (M_TOTAL, K_TOTAL) matrix. Call ONCE at module-init time (hoisted out of
    the per-call jitted path)."""
    w_bd = jnp.zeros((M_TOTAL, K_TOTAL), dtype)
    for di, w in enumerate(weights):
        w_t = jnp.transpose(jnp.asarray(w, dtype), (0, 2, 1))   # (C_OUT, K, C_IN)
        w_t = jnp.pad(w_t, ((0, 0), (0, 0), (0, C_IN_PAD - C_IN)))
        w_flat = w_t.reshape(C_OUT, K_PER_D)
        w_bd = w_bd.at[di * C_OUT:(di + 1) * C_OUT,
                       di * K_PER_D:(di + 1) * K_PER_D].set(w_flat)
    return w_bd


def _make_kernel(w_out, w_in):
    def kernel(x_ref, w_ref, o_ref):
        # x_ref: (C_IN_PAD, w_in)  w_ref: (M_TOTAL, K_TOTAL)  o_ref: (M_TOTAL, w_out)
        x = x_ref[...]
        # 9 unique lane shifts, each computed once and reused across the
        # 15 (dilation, tap) slab rows.
        shifted = {s: x[:, s:s + w_out] for s in UNIQUE_SHIFTS}
        slab = jnp.concatenate(
            [shifted[k * d] for d in DILATIONS for k in range(KSIZE)], axis=0
        )                                                   # (K_TOTAL, w_out)
        # One block-diagonal matmul covers every dilation and batch element.
        o_ref[...] = jnp.dot(
            w_ref[...], slab, preferred_element_type=jnp.float32
        ).astype(o_ref.dtype)

    return kernel


@jax.jit
def dia_convs_fused(x, w_bd):
    """x: (N, C_IN, L) f32; w_bd: packed (M_TOTAL, K_TOTAL) weights.

    Returns the fused output slab (M_TOTAL, N * l_xpad): row block di covers
    dilation DILATIONS[di]; batch b occupies columns [b*l_xpad, (b+1)*l_xpad),
    of which the first L - (KSIZE-1)*d are valid.
    """
    n, c_in, length = x.shape
    assert c_in == C_IN
    assert length > MAX_SHIFT, "input too short for largest dilation"

    l_xpad = _segment_stride(length)
    w_out = n * l_xpad
    w_in = _round_up(w_out + MAX_SHIFT, 128)

    # Fold batch into the lane axis with zero guard columns between segments,
    # pad channels 5 -> 8, and pad the tail so all 9 lane shifts stay in-bounds.
    x_pad = jnp.zeros((C_IN_PAD, n, l_xpad), x.dtype)
    x_pad = x_pad.at[:C_IN, :, :length].set(jnp.transpose(x, (1, 0, 2)))
    x_flat = x_pad.reshape(C_IN_PAD, w_out)
    x_flat = jnp.pad(x_flat, ((0, 0), (0, w_in - w_out)))

    flops = 2 * M_TOTAL * K_TOTAL * w_out
    bytes_accessed = 4 * (C_IN_PAD * w_in + M_TOTAL * K_TOTAL + M_TOTAL * w_out)

    return pl.pallas_call(
        _make_kernel(w_out, w_in),
        out_shape=jax.ShapeDtypeStruct((M_TOTAL, w_out), x.dtype),
        in_specs=[
            pl.BlockSpec(memory_space=pltpu.MemorySpace.VMEM),
            pl.BlockSpec(memory_space=pltpu.MemorySpace.VMEM),
        ],
        out_specs=pl.BlockSpec(memory_space=pltpu.MemorySpace.VMEM),
        compiler_params=pltpu.CompilerParams(vmem_limit_bytes=32 * 1024 * 1024),
        cost_estimate=pl.CostEstimate(
            flops=flops, transcendentals=0, bytes_accessed=bytes_accessed),
    )(x_flat, w_bd)
    # TODO(synk): for large L / N add a parallel grid axis over 128-lane output
    # chunks (with a 20-column halo) so v7x's 2 TensorCores are both used.


def dia_convs_forward(x, w_bd):
    """Host-side helper (outside the jitted path): returns the list of the 5
    dilated-conv outputs, matching DiaConvs.forward's per-conv results."""
    n, _, length = x.shape
    l_xpad = _segment_stride(length)
    slab = dia_convs_fused(x, w_bd)                          # (80, n*l_xpad)
    out = slab.reshape(M_TOTAL, n, l_xpad).transpose(1, 0, 2)  # (n, 80, l_xpad)
    outs = []
    for di, d in enumerate(DILATIONS):
        l_out = length - (KSIZE - 1) * d
        outs.append(out[:, di * C_OUT:(di + 1) * C_OUT, :l_out])
    return outs


def _reference_conv1d(x, w, dilation):
    # Pure-JAX reference (XLA conv) for correctness checking.
    return lax.conv_general_dilated(
        x, w,
        window_strides=(1,),
        padding="VALID",
        rhs_dilation=(dilation,),
        dimension_numbers=("NCH", "OIH", "NCH"),
    )


if __name__ == "__main__":
    key = jax.random.PRNGKey(0)
    kx, *kws = jax.random.split(key, 1 + NUM_D)

    # Small shapes consistent with the module: batch=2, C_in=5, L=64
    # (L must exceed (KSIZE-1)*max(dilation)=20).
    N, L = 2, 64
    x = jax.random.normal(kx, (N, C_IN, L), dtype=jnp.float32)
    weights = [
        0.1 * jax.random.normal(k, (C_OUT, C_IN, KSIZE), dtype=jnp.float32)
        for k in kws
    ]

    # Module-init-time weight packing (hoisted out of the per-call path).
    w_bd = pack_weights(weights)

    # Run the fused kernel once and block on the result.
    slab = jax.block_until_ready(dia_convs_fused(x, w_bd))

    # Extract per-dilation outputs and verify shapes + numerics vs. XLA conv.
    outs = dia_convs_forward(x, w_bd)
    outs = [jax.block_until_ready(o) for o in outs]
    for o, w, d in zip(outs, weights, DILATIONS):
        ref = _reference_conv1d(x, w, d)
        assert o.shape == (N, C_OUT, L - (KSIZE - 1) * d), (o.shape, d)
        assert jnp.allclose(o, ref, atol=1e-4, rtol=1e-4), f"mismatch at dilation={d}"

    print("KERNEL_OK")
</pallas_src>

<mosaic_0001>
module attributes {stable_mosaic.version = 11 : i64} {
  func.func @kernel(%arg0: memref<8x384xf32, #tpu.memory_space<vmem>>, %arg1: memref<80x120xf32, #tpu.memory_space<vmem>>, %arg2: memref<80x256xf32, #tpu.memory_space<vmem>>) attributes {dimension_semantics = [], scalar_prefetch = 0 : i64, scratch_operands = 0 : i64, tpu.core_type = #tpu.core_type<tc>} {
    %c0 = arith.constant 0 : index
    %c0_0 = arith.constant 0 : index
    %0 = vector.load %arg0[%c0, %c0_0] : memref<8x384xf32, #tpu.memory_space<vmem>>, vector<8x384xf32>
    %1 = vector.extract_strided_slice %0 {offsets = [0, 0], sizes = [8, 256], strides = [1, 1]} : vector<8x384xf32> to vector<8x256xf32>
    %2 = vector.extract_strided_slice %0 {offsets = [0, 1], sizes = [8, 256], strides = [1, 1]} : vector<8x384xf32> to vector<8x256xf32>
    %3 = vector.extract_strided_slice %0 {offsets = [0, 2], sizes = [8, 256], strides = [1, 1]} : vector<8x384xf32> to vector<8x256xf32>
    %4 = vector.extract_strided_slice %0 {offsets = [0, 3], sizes = [8, 256], strides = [1, 1]} : vector<8x384xf32> to vector<8x256xf32>
    %5 = vector.extract_strided_slice %0 {offsets = [0, 4], sizes = [8, 256], strides = [1, 1]} : vector<8x384xf32> to vector<8x256xf32>
    %6 = vector.extract_strided_slice %0 {offsets = [0, 6], sizes = [8, 256], strides = [1, 1]} : vector<8x384xf32> to vector<8x256xf32>
    %7 = vector.extract_strided_slice %0 {offsets = [0, 8], sizes = [8, 256], strides = [1, 1]} : vector<8x384xf32> to vector<8x256xf32>
    %8 = vector.extract_strided_slice %0 {offsets = [0, 10], sizes = [8, 256], strides = [1, 1]} : vector<8x384xf32> to vector<8x256xf32>
    %9 = vector.extract_strided_slice %0 {offsets = [0, 20], sizes = [8, 256], strides = [1, 1]} : vector<8x384xf32> to vector<8x256xf32>
    %10 = tpu.concatenate %1, %2, %3, %1, %3, %5, %1, %4, %6, %1, %5, %7, %1, %8, %9 in 0 : vector<8x256xf32>, vector<8x256xf32>, vector<8x256xf32>, vector<8x256xf32>, vector<8x256xf32>, vector<8x256xf32>, vector<8x256xf32>, vector<8x256xf32>, vector<8x256xf32>, vector<8x256xf32>, vector<8x256xf32>, vector<8x256xf32>, vector<8x256xf32>, vector<8x256xf32>, vector<8x256xf32> -> vector<120x256xf32>
    %c0_1 = arith.constant 0 : index
    %c0_2 = arith.constant 0 : index
    %11 = vector.load %arg1[%c0_1, %c0_2] : memref<80x120xf32, #tpu.memory_space<vmem>>, vector<80x120xf32>
    %cst = arith.constant dense<0.000000e+00> : vector<80x256xf32>
    %12 = tpu.matmul %11, %10, %cst {dimension_numbers = #tpu.dot_dimension_numbers<[1], [0], [0], [1], [0, 0, 1, 1], [], []>} : vector<80x120xf32>, vector<120x256xf32>, vector<80x256xf32> -> vector<80x256xf32>
    %c0_3 = arith.constant 0 : index
    %c0_4 = arith.constant 0 : index
    %13 = vector.load %arg2[%c0_3, %c0_4] : memref<80x256xf32, #tpu.memory_space<vmem>>, vector<80x256xf32>
    tpu.vector_store %arg2[%c0_3, %c0_4], %12 {strides = array<i32>} : memref<80x256xf32, #tpu.memory_space<vmem>>, vector<80x256xf32>,
    return
  }
}

</mosaic_0001>

<llo_original>
// kernel: dia_convs_fused.1
$region0: #{dia_convs_fused.1}
  #allocation0 [shape = 'u32[]', space=smem, size = 0x4, offset = 0x4, fixed_abs, tag = 'smem constant byte address 0x4 - core index']
  #allocation1 [shape = 'u32[144,128]{1,0:T(1,128)}', space=vmem, size = 0x12000, scoped, tag = 'internal scratch']
  %s0 = inlined_call_operand.vmem [shape: f32[8,384], index: 0, kind: input, shape index: {}]
  %s1 = inlined_call_operand.vmem [shape: f32[80,120], index: 1, kind: input, shape index: {}]
  %s2 = inlined_call_operand.hbm [shape: f32[80,256], index: 2, kind: output, shape index: {}]
  %s3 = sld [smem:[#allocation0]]
  $region18: #{dia_convs_fused.1} parent=0
    _
  %s5 = ssub.s32 1, %s3
  %s6 = scalar_select 0, %s5, %s3
  $region1: #{dia_convs_fused.1} parent=0
    #allocation2 [shape = 'u8[81920]{0}', space=vmem, size = 0x14000, scoped, tag = 'output window, operand 0, single buffered']
    #allocation3 [shape = 's32[1]{0}', space=sflag, size = 0x4, scoped, tag = 'scoped memory for dia_convs_fused.1']
    %7 = vsyncpa [#allocation3], 0
    // Predicated region
    $region2: #{dia_convs_fused.1} parent=1 // pred_check
      _
    $region3: #{dia_convs_fused.1} parent=1 // pred_check_branch
      %9 = sbr.rel (0) target = $region5
    $region4: #{dia_convs_fused.1} parent=1 // pred_region
      _
    $region5: #{dia_convs_fused.1} parent=1 // pred_fallthru
      _
    // Predicated region
    $region6: #{dia_convs_fused.1} parent=1 // pred_check
      _
    $region7: #{dia_convs_fused.1} parent=1 // pred_check_branch
      %11 = sbr.rel (0) target = $region9
    $region8: #{dia_convs_fused.1} parent=1 // pred_region
      _
    $region9: #{dia_convs_fused.1} parent=1 // pred_fallthru
      _
    %v12 = vld [vmem:[%s0] sm:$0xff]
    %v13 = vld [vmem:[%s0 + $0x8] sm:$0xff]
    %v14 = vld [vmem:[%s0 + $0x10] sm:$0xff]
    %18 = vrot.lane.b32.xlu0 %v12, 127
    %v19 = vpop.permute.xlu0 %18
    %20 = vrot.lane.b32.xlu0 %v13, 127
    %v21 = vpop.permute.xlu0 %20
    %22 = vrot.lane.b32.xlu0 %v14, 127
    %v23 = vpop.permute.xlu0 %22
    %vm24 = vcmask 1039360
    %v25 = vsel %vm24, %v19, %v21
    %v26 = vsel %vm24, %v21, %v23
    %29 = vrot.lane.b32.xlu0 %v12, 126
    %v30 = vpop.permute.xlu0 %29
    %31 = vrot.lane.b32.xlu0 %v13, 126
    %v32 = vpop.permute.xlu0 %31
    %33 = vrot.lane.b32.xlu0 %v14, 126
    %v34 = vpop.permute.xlu0 %33
    %vm35 = vcmask 1031168
    %v36 = vsel %vm35, %v30, %v32
    %v37 = vsel %vm35, %v32, %v34
    %40 = vrot.lane.b32.xlu0 %v12, 124
    %v41 = vpop.permute.xlu0 %40
    %42 = vrot.lane.b32.xlu0 %v13, 124
    %v43 = vpop.permute.xlu0 %42
    %44 = vrot.lane.b32.xlu0 %v14, 124
    %v45 = vpop.permute.xlu0 %44
    %vm46 = vcmask 1014784
    %v47 = vsel %vm46, %v41, %v43
    %v48 = vsel %vm46, %v43, %v45
    %51 = vrot.lane.b32.xlu0 %v12, 125
    %v52 = vpop.permute.xlu0 %51
    %53 = vrot.lane.b32.xlu0 %v13, 125
    %v54 = vpop.permute.xlu0 %53
    %55 = vrot.lane.b32.xlu0 %v14, 125
    %v56 = vpop.permute.xlu0 %55
    %vm57 = vcmask 1022976
    %v58 = vsel %vm57, %v52, %v54
    %v59 = vsel %vm57, %v54, %v56
    %62 = vrot.lane.b32.xlu0 %v12, 122
    %v63 = vpop.permute.xlu0 %62
    %64 = vrot.lane.b32.xlu0 %v13, 122
    %v65 = vpop.permute.xlu0 %64
    %66 = vrot.lane.b32.xlu0 %v14, 122
    %v67 = vpop.permute.xlu0 %66
    %vm68 = vcmask 998400
    %v69 = vsel %vm68, %v63, %v65
    %v70 = vsel %vm68, %v65, %v67
    %73 = vrot.lane.b32.xlu0 %v12, 120
    %v74 = vpop.permute.xlu0 %73
    %75 = vrot.lane.b32.xlu0 %v13, 120
    %v76 = vpop.permute.xlu0 %75
    %77 = vrot.lane.b32.xlu0 %v14, 120
    %v78 = vpop.permute.xlu0 %77
    %vm79 = vcmask 982016
    %v80 = vsel %vm79, %v74, %v76
    %v81 = vsel %vm79, %v76, %v78
    %84 = vrot.lane.b32.xlu0 %v12, 118
    %v85 = vpop.permute.xlu0 %84
    %86 = vrot.lane.b32.xlu0 %v13, 118
    %v87 = vpop.permute.xlu0 %86
    %88 = vrot.lane.b32.xlu0 %v14, 118
    %v89 = vpop.permute.xlu0 %88
    %vm90 = vcmask 965632
    %v91 = vsel %vm90, %v85, %v87
    %v92 = vsel %vm90, %v87, %v89
    %95 = vrot.lane.b32.xlu0 %v12, 108
    %v96 = vpop.permute.xlu0 %95
    %97 = vrot.lane.b32.xlu0 %v13, 108
    %v98 = vpop.permute.xlu0 %97
    %99 = vrot.lane.b32.xlu0 %v14, 108
    %v100 = vpop.permute.xlu0 %99
    %vm101 = vcmask 883712
    %v102 = vsel %vm101, %v96, %v98
    %v103 = vsel %vm101, %v98, %v100
    %v106 = vld [vmem:[%s1] sm:$0xff]
    %v107 = vld [vmem:[%s1 + $0x8] sm:$0xff]
    %v108 = vld [vmem:[%s1 + $0x10] sm:$0xff]
    %v109 = vld [vmem:[%s1 + $0x18] sm:$0xff]
    %v110 = vld [vmem:[%s1 + $0x20] sm:$0xff]
    %v111 = vld [vmem:[%s1 + $0x28] sm:$0xff]
    %v112 = vld [vmem:[%s1 + $0x30] sm:$0xff]
    %v113 = vld [vmem:[%s1 + $0x38] sm:$0xff]
    %v114 = vld [vmem:[%s1 + $0x40] sm:$0xff]
    %v115 = vld [vmem:[%s1 + $0x48] sm:$0xff]
    %v117 = vsel %vm79, %v106, 0
    %v120 = vsel %vm79, %v107, 0
    %v123 = vsel %vm79, %v108, 0
    %v126 = vsel %vm79, %v109, 0
    %v129 = vsel %vm79, %v110, 0
    %v132 = vsel %vm79, %v111, 0
    %v135 = vsel %vm79, %v112, 0
    %v138 = vsel %vm79, %v113, 0
    %v141 = vsel %vm79, %v114, 0
    %v144 = vsel %vm79, %v115, 0
    %146 = vmatprep.subr.mxu0 %v13
    %147 = vmatpush1.msra.mxu0 %v12
    %148 = vmatprep.subr.mxu0 %v26
    %149 = vmatpush1.msra.mxu0 %v25
    %150 = vmatprep.subr.mxu0 %v37
    %151 = vmatpush1.msra.mxu0 %v36
    %152 = vmatprep.subr.mxu0 %v13
    %153 = vmatpush1.msra.mxu0 %v12
    %154 = vmatprep.subr.mxu0 %v37
    %155 = vmatpush1.msra.mxu0 %v36
    %156 = vmatprep.subr.mxu0 %v48
    %157 = vmatpush1.msra.mxu0 %v47
    %158 = vmatprep.subr.mxu0 %v13
    %159 = vmatpush1.msra.mxu0 %v12
    %160 = vmatprep.subr.mxu0 %v59
    %161 = vmatpush1.msra.mxu0 %v58
    %162 = vmatprep.subr.mxu0 %v70
    %163 = vmatpush1.msra.mxu0 %v69
    %164 = vmatprep.subr.mxu0 %v13
    %165 = vmatpush1.msra.mxu0 %v12
    %166 = vmatprep.subr.mxu0 %v48
    %167 = vmatpush1.msra.mxu0 %v47
    %168 = vmatprep.subr.mxu0 %v81
    %169 = vmatpush1.msra.mxu0 %v80
    %170 = vmatprep.subr.mxu0 %v13
    %171 = vmatpush1.msra.mxu0 %v12
    %172 = vmatprep.subr.mxu0 %v92
    %173 = vmatpush1.msra.mxu0 %v91
    %174 = vmatprep.subr.mxu0 %v103
    %175 = vmatpush1.msra.mxu0 %v102
    %176 = vmatprep.subr.mxu0 0.0
    %177 = vmatpush1.msra.mxu0 0.0
    %178 = vmatprep.subr.mxu0 0.0
    %179 = vmatpush1.msra.mxu0 0.0
    %180 = vmatprep.subr.mxu0 0.0
    %181 = vmatpush1.msra.mxu0 0.0
    %182 = vmatprep.subr.mxu0 0.0
    %183 = vmatpush1.msra.mxu0 0.0
    %184 = vmatprep.subr.mxu0 0.0
    %185 = vmatpush1.msra.mxu0 0.0
    %186 = vmatprep.subr.mxu0 0.0
    %187 = vmatpush1.msra.mxu0 0.0
    %188 = vmatprep.subr.mxu0 0.0
    %189 = vmatpush1.msra.mxu0 0.0
    %190 = vmatprep.subr.mxu0 0.0
    %191 = vmatpush1.msra.mxu0 0.0
    %192 = vmatprep.subr.mxu0 0.0
    %193 = vmatpush1.msra.mxu0 0.0
    %194 = vmatprep.subr.mxu0 0.0
    %195 = vmatpush1.msra.mxu0 0.0
    %196 = vmatprep.subr.mxu0 0.0
    %197 = vmatpush1.msra.mxu0 0.0
    %198 = vmatprep.subr.mxu0 0.0
    %199 = vmatpush1.msra.mxu0 0.0
    %200 = vmatprep.subr.mxu0 0.0
    %201 = vmatpush1.msra.mxu0 0.0
    %202 = vmatprep.subr.mxu0 0.0
    %203 = vmatpush1.msra.mxu0 0.0
    %204 = vmatprep.subr.mxu0 0.0
    %205 = vmatpush1.msra.mxu0 0.0
    %206 = vmatprep.subr.mxu0 0.0
    %207 = vmatpush1.msra.mxu0 0.0
    %208 = vmatprep.subr.mxu0 0.0
    %209 = vmatpush1.msra.mxu0 0.0
    %210 = vmatprep.mubr.f32.mxu0 0.0
    %211 = vmatmul.mubr.f32.gmra.mrb[0].mxu0 %v117
    %v212 = vpop.f32.mrb[0].mxu0
    %v213 = vadd.f32 0.0, %v212
    %v214 = vpop.f32.mrb[0].mxu0
    %v215 = vadd.f32 0.0, %v214
    %216 = vmatprep.mubr.f32.mxu0 0.0
    %217 = vmatmul.mubr.f32.gmra.mrb[0].mxu0 %v120
    %v218 = vpop.f32.mrb[0].mxu0
    %v219 = vadd.f32 0.0, %v218
    %v220 = vpop.f32.mrb[0].mxu0
    %v221 = vadd.f32 0.0, %v220
    %222 = vmatprep.mubr.f32.mxu0 0.0
    %223 = vmatmul.mubr.f32.gmra.mrb[0].mxu0 %v123
    %v224 = vpop.f32.mrb[0].mxu0
    %v225 = vadd.f32 0.0, %v224
    %v226 = vpop.f32.mrb[0].mxu0
    %v227 = vadd.f32 0.0, %v226
    %228 = vmatprep.mubr.f32.mxu0 0.0
    %229 = vmatmul.mubr.f32.gmra.mrb[0].mxu0 %v126
    %v230 = vpop.f32.mrb[0].mxu0
    %v231 = vadd.f32 0.0, %v230
    %v232 = vpop.f32.mrb[0].mxu0
    %v233 = vadd.f32 0.0, %v232
    %234 = vmatprep.mubr.f32.mxu0 0.0
    %235 = vmatmul.mubr.f32.gmra.mrb[0].mxu0 %v129
    %v236 = vpop.f32.mrb[0].mxu0
    %v237 = vadd.f32 0.0, %v236
    %v238 = vpop.f32.mrb[0].mxu0
    %v239 = vadd.f32 0.0, %v238
    %240 = vmatprep.mubr.f32.mxu0 0.0
    %241 = vmatmul.mubr.f32.gmra.mrb[0].mxu0 %v132
    %v242 = vpop.f32.mrb[0].mxu0
    %v243 = vadd.f32 0.0, %v242
    %v244 = vpop.f32.mrb[0].mxu0
    %v245 = vadd.f32 0.0, %v244
    %246 = vmatprep.mubr.f32.mxu0 0.0
    %247 = vmatmul.mubr.f32.gmra.mrb[0].mxu0 %v135
    %v248 = vpop.f32.mrb[0].mxu0
    %v249 = vadd.f32 0.0, %v248
    %v250 = vpop.f32.mrb[0].mxu0
    %v251 = vadd.f32 0.0, %v250
    %252 = vmatprep.mubr.f32.mxu0 0.0
    %253 = vmatmul.mubr.f32.gmra.mrb[0].mxu0 %v138
    %v254 = vpop.f32.mrb[0].mxu0
    %v255 = vadd.f32 0.0, %v254
    %v256 = vpop.f32.mrb[0].mxu0
    %v257 = vadd.f32 0.0, %v256
    %258 = vmatprep.mubr.f32.mxu0 0.0
    %259 = vmatmul.mubr.f32.gmra.mrb[0].mxu0 %v141
    %v260 = vpop.f32.mrb[0].mxu0
    %v261 = vadd.f32 0.0, %v260
    %v262 = vpop.f32.mrb[0].mxu0
    %v263 = vadd.f32 0.0, %v262
    %264 = vmatprep.mubr.f32.mxu0 0.0
    %265 = vmatmul.mubr.f32.gmra.mrb[0].mxu0 %v144
    %v266 = vpop.f32.mrb[0].mxu0
    %v267 = vadd.f32 0.0, %v266
    %v268 = vpop.f32.mrb[0].mxu0
    %v269 = vadd.f32 0.0, %v268
    %270 = vdwg.mxu0
    %271 = vst [vmem:[#allocation2] sm:$0xff] %v213
    %272 = vst [vmem:[#allocation2 + $0x8] sm:$0xff] %v215
    %273 = vst [vmem:[#allocation2 + $0x10] sm:$0xff] %v219
    %274 = vst [vmem:[#allocation2 + $0x18] sm:$0xff] %v221
    %275 = vst [vmem:[#allocation2 + $0x20] sm:$0xff] %v225
    %276 = vst [vmem:[#allocation2 + $0x28] sm:$0xff] %v227
    %277 = vst [vmem:[#allocation2 + $0x30] sm:$0xff] %v231
    %278 = vst [vmem:[#allocation2 + $0x38] sm:$0xff] %v233
    %279 = vst [vmem:[#allocation2 + $0x40] sm:$0xff] %v237
    %280 = vst [vmem:[#allocation2 + $0x48] sm:$0xff] %v239
    %281 = vst [vmem:[#allocation2 + $0x50] sm:$0xff] %v243
    %282 = vst [vmem:[#allocation2 + $0x58] sm:$0xff] %v245
    %283 = vst [vmem:[#allocation2 + $0x60] sm:$0xff] %v249
    %284 = vst [vmem:[#allocation2 + $0x68] sm:$0xff] %v251
    %285 = vst [vmem:[#allocation2 + $0x70] sm:$0xff] %v255
    %286 = vst [vmem:[#allocation2 + $0x78] sm:$0xff] %v257
    %287 = vst [vmem:[#allocation2 + $0x80] sm:$0xff] %v261
    %288 = vst [vmem:[#allocation2 + $0x88] sm:$0xff] %v263
    %289 = vst [vmem:[#allocation2 + $0x90] sm:$0xff] %v267
    %290 = vst [vmem:[#allocation2 + $0x98] sm:$0xff] %v269
    // Predicated region
    $region10: #{dia_convs_fused.1} parent=1 // pred_check
      _
    $region11: #{dia_convs_fused.1} parent=1 // pred_check_branch
      %292 = sbr.rel (0) target = $region13
    $region12: #{dia_convs_fused.1} parent=1 // pred_region
      %s294 = ssub.s32 2560, 2560
      %295 = vsyncadd [#allocation3], %s294
      %s296 = sshll.u32 [#allocation2], 4
      %s297 = int_to_ptr.vmem [resolvable:$true] %s296
      %302 = dma.vmem_to_hbm [thread:$0]  %s297, 2560, %s2, [#allocation3], 256, 256, 16
    $region13: #{dia_convs_fused.1} parent=1 // pred_fallthru
      _
    // Predicated region
    $region14: #{dia_convs_fused.1} parent=1 // pred_check
      _
    $region15: #{dia_convs_fused.1} parent=1 // pred_check_branch
      %304 = sbr.rel (0) target = $region17
    $region16: #{dia_convs_fused.1} parent=1 // pred_region
      %305 = dma.done [#allocation3], 2560
    $region17: #{dia_convs_fused.1} parent=1 // pred_fallthru
      _
    %306 = vsyncpa [#allocation3], 1

</llo_original>
